<compile_context>
chip_gen: v7x
topology: tpu7x:2x2x1
jax: 0.10.0
libtpu: 0.0.40
codegen_flags: <defaults>
</compile_context>

<pallas_src>
import jax
import jax.numpy as jnp
from jax.experimental import pallas as pl
from jax.experimental.pallas import tpu as pltpu


def _make_mm_cat_kernel(K, N):
    """Builds a kernel computing o = [x1@x2 | x1@x2] for static tiny K, N."""

    def mm_cat_kernel(x1_ref, x2_ref, o_ref):
        x1 = x1_ref[...]  # (M, K) f32
        x2 = x2_ref[...]  # (K, N) f32
        # K is tiny (4): unrolled VPU multiply-accumulate (outer products),
        # avoiding MXU vmatmul push + result-FIFO drain on a latency-bound op.
        acc = x1[:, 0:1] * x2[0:1, :]
        for k in range(1, K):
            acc = acc + x1[:, k : k + 1] * x2[k : k + 1, :]
        # torch.cat((a, b), dim=1) with a == b: write the single product to
        # both column halves (both are masked partial-lane stores; free here).
        o_ref[:, :N] = acc
        o_ref[:, N:] = acc

    return mm_cat_kernel


def model_forward(x1, x2):
    M, K = x1.shape
    K2, N = x2.shape
    assert K == K2, (x1.shape, x2.shape)

    out_shape = jax.ShapeDtypeStruct((M, 2 * N), jnp.float32)
    cost = pl.CostEstimate(
        flops=2 * M * K * N,
        transcendentals=0,
        bytes_accessed=4 * (M * K + K * N + M * 2 * N),
    )
    return pl.pallas_call(
        _make_mm_cat_kernel(K, N),
        out_shape=out_shape,
        in_specs=[
            pl.BlockSpec(memory_space=pltpu.MemorySpace.VMEM),
            pl.BlockSpec(memory_space=pltpu.MemorySpace.VMEM),
        ],
        out_specs=pl.BlockSpec(memory_space=pltpu.MemorySpace.VMEM),
        cost_estimate=cost,
    )(x1, x2)


if __name__ == "__main__":
    key = jax.random.PRNGKey(0)
    k1, k2 = jax.random.split(key)
    # Shapes from the PyTorch script: x1 = randn(3, 4), x2 = randn(4, 3)
    x1 = jax.random.normal(k1, (3, 4), dtype=jnp.float32)
    x2 = jax.random.normal(k2, (4, 3), dtype=jnp.float32)

    out = jax.block_until_ready(model_forward(x1, x2))

    # Reference in plain JAX: torch.cat((x1@x2, x1@x2), dim=1).
    a_ref = x1 @ x2
    ref = jnp.concatenate([a_ref, a_ref], axis=1)
    assert out.shape == (3, 6), out.shape
    assert jnp.allclose(out, ref, atol=1e-5, rtol=1e-5)

    print("KERNEL_OK")
</pallas_src>

<mosaic_0001>
module attributes {stable_mosaic.version = 11 : i64} {
  func.func @mm_cat_kernel(%arg0: memref<3x4xf32, #tpu.memory_space<vmem>>, %arg1: memref<4x3xf32, #tpu.memory_space<vmem>>, %arg2: memref<3x6xf32, #tpu.memory_space<vmem>>) attributes {dimension_semantics = [], scalar_prefetch = 0 : i64, scratch_operands = 0 : i64, tpu.core_type = #tpu.core_type<tc>} {
    %c0 = arith.constant 0 : index
    %c0_0 = arith.constant 0 : index
    %0 = vector.load %arg0[%c0, %c0_0] : memref<3x4xf32, #tpu.memory_space<vmem>>, vector<3x4xf32>
    %c0_1 = arith.constant 0 : index
    %c0_2 = arith.constant 0 : index
    %1 = vector.load %arg1[%c0_1, %c0_2] : memref<4x3xf32, #tpu.memory_space<vmem>>, vector<4x3xf32>
    %2 = vector.extract_strided_slice %0 {offsets = [0, 0], sizes = [3, 1], strides = [1, 1]} : vector<3x4xf32> to vector<3x1xf32>
    %3 = vector.extract_strided_slice %1 {offsets = [0, 0], sizes = [1, 3], strides = [1, 1]} : vector<4x3xf32> to vector<1x3xf32>
    %4 = vector.broadcast %2 : vector<3x1xf32> to vector<3x3xf32>
    %5 = vector.broadcast %3 : vector<1x3xf32> to vector<3x3xf32>
    %6 = arith.mulf %4, %5 : vector<3x3xf32>
    %7 = vector.extract_strided_slice %0 {offsets = [0, 1], sizes = [3, 1], strides = [1, 1]} : vector<3x4xf32> to vector<3x1xf32>
    %8 = vector.extract_strided_slice %1 {offsets = [1, 0], sizes = [1, 3], strides = [1, 1]} : vector<4x3xf32> to vector<1x3xf32>
    %9 = vector.broadcast %7 : vector<3x1xf32> to vector<3x3xf32>
    %10 = vector.broadcast %8 : vector<1x3xf32> to vector<3x3xf32>
    %11 = arith.mulf %9, %10 : vector<3x3xf32>
    %12 = arith.addf %6, %11 : vector<3x3xf32>
    %13 = vector.extract_strided_slice %0 {offsets = [0, 2], sizes = [3, 1], strides = [1, 1]} : vector<3x4xf32> to vector<3x1xf32>
    %14 = vector.extract_strided_slice %1 {offsets = [2, 0], sizes = [1, 3], strides = [1, 1]} : vector<4x3xf32> to vector<1x3xf32>
    %15 = vector.broadcast %13 : vector<3x1xf32> to vector<3x3xf32>
    %16 = vector.broadcast %14 : vector<1x3xf32> to vector<3x3xf32>
    %17 = arith.mulf %15, %16 : vector<3x3xf32>
    %18 = arith.addf %12, %17 : vector<3x3xf32>
    %19 = vector.extract_strided_slice %0 {offsets = [0, 3], sizes = [3, 1], strides = [1, 1]} : vector<3x4xf32> to vector<3x1xf32>
    %20 = vector.extract_strided_slice %1 {offsets = [3, 0], sizes = [1, 3], strides = [1, 1]} : vector<4x3xf32> to vector<1x3xf32>
    %21 = vector.broadcast %19 : vector<3x1xf32> to vector<3x3xf32>
    %22 = vector.broadcast %20 : vector<1x3xf32> to vector<3x3xf32>
    %23 = arith.mulf %21, %22 : vector<3x3xf32>
    %24 = arith.addf %18, %23 : vector<3x3xf32>
    %c0_3 = arith.constant 0 : index
    %c0_4 = arith.constant 0 : index
    %25 = vector.load %arg2[%c0_3, %c0_4] : memref<3x6xf32, #tpu.memory_space<vmem>>, vector<3x3xf32>
    tpu.vector_store %arg2[%c0_3, %c0_4], %24 {strides = array<i32>} : memref<3x6xf32, #tpu.memory_space<vmem>>, vector<3x3xf32>,
    %c0_5 = arith.constant 0 : index
    %c3 = arith.constant 3 : index
    %26 = vector.load %arg2[%c0_5, %c3] : memref<3x6xf32, #tpu.memory_space<vmem>>, vector<3x3xf32>
    tpu.vector_store %arg2[%c0_5, %c3], %24 {strides = array<i32>} : memref<3x6xf32, #tpu.memory_space<vmem>>, vector<3x3xf32>,
    return
  }
}

</mosaic_0001>

<llo_original>
// kernel: tpu_custom_call.1
$region0: #{tpu_custom_call.1}
  #allocation0 [shape = 'u32[]', space=smem, size = 0x4, offset = 0x4, fixed_abs, tag = 'smem constant byte address 0x4 - core index']
  #allocation1 [shape = 'u32[144,128]{1,0:T(1,128)}', space=vmem, size = 0x12000, scoped, tag = 'internal scratch']
  %s0 = inlined_call_operand.hbm [shape: f32[3,4], index: 0, kind: input, shape index: {}]
  %s1 = inlined_call_operand.hbm [shape: f32[4,3], index: 1, kind: input, shape index: {}]
  %s2 = inlined_call_operand.hbm [shape: f32[3,6], index: 2, kind: output, shape index: {}]
  %s3 = sld [smem:[#allocation0]]
  $region26: #{tpu_custom_call.1} parent=0
    _
  %s5 = ssub.s32 1, %s3
  %s6 = scalar_select 0, %s5, %s3
  $region1: #{tpu_custom_call.1} parent=0
    #allocation2 [shape = 'u8[2048]{0}', space=vmem, size = 0x800, scoped, tag = 'input window, operand 0, single buffered']
    #allocation3 [shape = 's32[1]{0}', space=sflag, size = 0x4, scoped, tag = 'scoped memory for tpu_custom_call.1']
    #allocation4 [shape = 's32[1]{0}', space=sflag, size = 0x4, scoped, tag = 'scoped memory for tpu_custom_call.1']
    #allocation5 [shape = 'u8[2048]{0}', space=vmem, size = 0x800, scoped, tag = 'input window, operand 1, single buffered']
    #allocation6 [shape = 's32[1]{0}', space=sflag, size = 0x4, scoped, tag = 'scoped memory for tpu_custom_call.1']
    #allocation7 [shape = 'u8[2048]{0}', space=vmem, size = 0x800, scoped, tag = 'output window, operand 0, single buffered']
    %7 = vsyncpa [#allocation3], 0
    %8 = vsyncpa [#allocation6], 0
    %9 = vsyncpa [#allocation4], 0
    // Predicated region
    $region2: #{tpu_custom_call.1} parent=1 // pred_check
      _
    $region3: #{tpu_custom_call.1} parent=1 // pred_check_branch
      %11 = sbr.rel (0) target = $region5
    $region4: #{tpu_custom_call.1} parent=1 // pred_region
      %s13 = ssub.s32 64, 64
      %14 = vsyncadd [#allocation3], %s13
      %s16 = sshll.u32 [#allocation2], 4
      %s17 = int_to_ptr.vmem [resolvable:$true] %s16
      %19 = dma.hbm_to_vmem [thread:$0]  %s0, 64, %s17, [#allocation3]
    $region5: #{tpu_custom_call.1} parent=1 // pred_fallthru
      _
    // Predicated region
    $region6: #{tpu_custom_call.1} parent=1 // pred_check
      _
    $region7: #{tpu_custom_call.1} parent=1 // pred_check_branch
      %21 = sbr.rel (0) target = $region9
    $region8: #{tpu_custom_call.1} parent=1 // pred_region
      %s23 = ssub.s32 64, 64
      %24 = vsyncadd [#allocation6], %s23
      %s26 = sshll.u32 [#allocation5], 4
      %s27 = int_to_ptr.vmem [resolvable:$true] %s26
      %29 = dma.hbm_to_vmem [thread:$0]  %s1, 64, %s27, [#allocation6]
    $region9: #{tpu_custom_call.1} parent=1 // pred_fallthru
      _
    // Predicated region
    $region10: #{tpu_custom_call.1} parent=1 // pred_check
      _
    $region11: #{tpu_custom_call.1} parent=1 // pred_check_branch
      %31 = sbr.rel (0) target = $region13
    $region12: #{tpu_custom_call.1} parent=1 // pred_region
      %32 = dma.done [#allocation3], 64
    $region13: #{tpu_custom_call.1} parent=1 // pred_fallthru
      _
    // Predicated region
    $region14: #{tpu_custom_call.1} parent=1 // pred_check
      _
    $region15: #{tpu_custom_call.1} parent=1 // pred_check_branch
      %34 = sbr.rel (0) target = $region17
    $region16: #{tpu_custom_call.1} parent=1 // pred_region
      %35 = dma.done [#allocation6], 64
    $region17: #{tpu_custom_call.1} parent=1 // pred_fallthru
      _
    %v36 = vld [vmem:[#allocation2] sm:$0x7]
    %v37 = vld [vmem:[#allocation5] sm:$0xf]
    %39 = vset.pattern.permute.xlu0 0
    %40 = vperm.xlu0 %39, %v36
    %v41 = vpop.permute.xlu0 %40
    %v43 = vlaneseq
    %v44 = vshrl.u32 %v43, 7
    %v45 = vsub.s32 0, %v44
    %v46 = vrot.slane %v37, %v45
    %v47 = vmul.f32 %v41, %v46
    %48 = vset.pattern.permute.xlu0 1
    %49 = vperm.xlu0 %48, %v36
    %v50 = vpop.permute.xlu0 %49
    %v52 = vlaneseq
    %v53 = vshrl.u32 %v52, 7
    %v54 = vsub.s32 1, %v53
    %v55 = vrot.slane %v37, %v54
    %v56 = vmul.f32 %v50, %v55
    %v57 = vadd.f32 %v47, %v56
    %58 = vset.pattern.permute.xlu0 2
    %59 = vperm.xlu0 %58, %v36
    %v60 = vpop.permute.xlu0 %59
    %v62 = vlaneseq
    %v63 = vshrl.u32 %v62, 7
    %v64 = vsub.s32 2, %v63
    %v65 = vrot.slane %v37, %v64
    %v66 = vmul.f32 %v60, %v65
    %v67 = vadd.f32 %v57, %v66
    %68 = vset.pattern.permute.xlu0 3
    %69 = vperm.xlu0 %68, %v36
    %v70 = vpop.permute.xlu0 %69
    %v72 = vlaneseq
    %v73 = vshrl.u32 %v72, 7
    %v74 = vsub.s32 3, %v73
    %v75 = vrot.slane %v37, %v74
    %v76 = vmul.f32 %v70, %v75
    %v77 = vadd.f32 %v67, %v76
    %vm78 = vcmask 18432
    %79 = vst.msk [vmem:[#allocation7] sm:$0x7] %vm78, %v77
    %81 = vrot.lane.b32.xlu0 %v77, 3
    %v82 = vpop.permute.xlu0 %81
    %vm84 = vcmask 43032
    %85 = vst.msk [vmem:[#allocation7] sm:$0x7] %vm84, %v82
    // Predicated region
    $region18: #{tpu_custom_call.1} parent=1 // pred_check
      _
    $region19: #{tpu_custom_call.1} parent=1 // pred_check_branch
      %87 = sbr.rel (0) target = $region21
    $region20: #{tpu_custom_call.1} parent=1 // pred_region
      %s89 = ssub.s32 64, 64
      %90 = vsyncadd [#allocation4], %s89
      %s92 = sshll.u32 [#allocation7], 4
      %s93 = int_to_ptr.vmem [resolvable:$true] %s92
      %95 = dma.vmem_to_hbm [thread:$0]  %s93, 64, %s2, [#allocation4]
    $region21: #{tpu_custom_call.1} parent=1 // pred_fallthru
      _
    // Predicated region
    $region22: #{tpu_custom_call.1} parent=1 // pred_check
      _
    $region23: #{tpu_custom_call.1} parent=1 // pred_check_branch
      %97 = sbr.rel (0) target = $region25
    $region24: #{tpu_custom_call.1} parent=1 // pred_region
      %98 = dma.done [#allocation4], 64
    $region25: #{tpu_custom_call.1} parent=1 // pred_fallthru
      _
    %99 = vsyncpa [#allocation3], 1
    %100 = vsyncpa [#allocation6], 1
    %101 = vsyncpa [#allocation4], 1

</llo_original>
